<compile_context>
chip_gen: v7x
topology: tpu7x:2x2x1
jax: 0.10.0
libtpu: 0.0.40
codegen_flags: <defaults>
</compile_context>

<pallas_src>
import functools

import numpy as np
import jax
import jax.numpy as jnp
from jax.experimental import pallas as pl
from jax.experimental.pallas import tpu as pltpu


_LEAKY_SLOPE = 0.01          # nn.LeakyReLU() default negative_slope


def _embed_kernel(x_ref, w_ref, shift_ref, o_ref):
    """One (batch, spatial-tile) block of the fused forward pass.

    x_ref:     (1, rr*Cin, tile_p)  pool-tap-expanded input (compute dtype)
    w_ref:     (Cout, rr*Cin)       grouped 1x1 conv weight, AvgPool's 1/rr
                                    and the BN scale folded in
    shift_ref: (Cout, 1)            folded BN shift (f32)
    o_ref:     (1, Cout, tile_p)
    """
    # conv + avg-pool + BN-scale in ONE lane-dense MXU matmul (f32 accum).
    y = jnp.dot(w_ref[...], x_ref[0], preferred_element_type=jnp.float32)
    z = y + shift_ref[...]                         # BN shift, f32
    z = jnp.where(z >= 0, z, _LEAKY_SLOPE * z)     # LeakyReLU, f32
    o_ref[0] = z.astype(o_ref.dtype)


def _cdiv(a, b):
    return -(-a // b)


def _pick_tile_p(n_batch, howo, k_in, c_out, in_isz, out_isz):
    """Spatial (lane) tile: multiple of 128, sized so
    2*in_block + 2*out_block + 2*weight stays under ~24 MiB, then shrunk (if
    possible) until the (N, spatial) grid has >= 4 steps for megacore / v7x."""
    LANE = 128
    budget = 24 * 1024 * 1024 - 2 * (c_out * k_in * in_isz + c_out * 4)
    per_col = 2 * (k_in * in_isz + c_out * out_isz)        # double-buffered
    max_cols = max(LANE, budget // max(per_col, 1))
    want = _cdiv(howo, LANE) * LANE                        # padded spatial extent
    tile = max(LANE, (min(max_cols, want) // LANE) * LANE)
    while n_batch * _cdiv(howo, tile) < 4 and tile > LANE:
        tile = max(LANE, (tile // 2 // LANE) * LANE)
    return tile


def group_pixel_embed(x_nchw, weight, gamma, beta, run_mean, run_var, *,
                      n_group, spatial_reduce, eps=1e-5,
                      compute_dtype=jnp.bfloat16, out_dtype=None):
    """x_nchw: (N, Cin, H, W).  Returns (N, Cout, Ho, Wo), matching PyTorch."""
    N, Cin, H, W = x_nchw.shape
    Cout = weight.shape[0]
    r = spatial_reduce
    Ho, Wo = H // r, W // r
    HoWo, rr = Ho * Wo, r * r
    ipg, opg = Cin // n_group, Cout // n_group
    K = rr * Cin
    out_dtype = x_nchw.dtype if out_dtype is None else out_dtype
    in_isz = jnp.dtype(compute_dtype).itemsize
    out_isz = jnp.dtype(out_dtype).itemsize

    # ---- spatial tiling / padding (lane-dense stores, grid parallelism) ----
    tile_p = _pick_tile_p(N, HoWo, K, Cout, in_isz, out_isz)
    P = _cdiv(HoWo, tile_p) * tile_p

    # ---- layout plumbing: NCHW -> (N, rr*Cin, P) in the compute dtype -------
    # Single XLA pass (crop + cast + transpose + pad); allow_input_fusion on
    # this operand lets XLA fuse it into the pallas_call instead of
    # materialising it in HBM.
    x = x_nchw[:, :, :Ho * r, :Wo * r].astype(compute_dtype)   # AvgPool floor-crop
    x = x.reshape(N, Cin, Ho, r, Wo, r)
    x = jnp.transpose(x, (0, 3, 5, 1, 2, 4))                   # (N, r, r, Cin, Ho, Wo)
    x = x.reshape(N, K, HoWo)
    if P != HoWo:
        x = jnp.pad(x, ((0, 0), (0, 0), (0, P - HoWo)))

    # ---- parameter folding (trace-time, tiny) -------------------------------
    scale = gamma / jnp.sqrt(run_var + eps)                     # (Cout,)
    shift = (beta - run_mean * scale).reshape(Cout, 1).astype(jnp.float32)
    w2 = weight.reshape(Cout, ipg)                              # (Cout, Cin/groups)
    go = jnp.arange(Cout) // opg
    gi = jnp.arange(Cin) // ipg
    w_bd = jnp.where(go[:, None] == gi[None, :],                # block-diagonal
                     jnp.tile(w2, (1, n_group)), 0.0)           # (Cout, Cin)
    # fold AvgPool (1/rr) + BN scale, replicate across the rr pooling taps
    w_big = (jnp.tile(w_bd, (1, rr)) * (scale[:, None] / rr)).astype(compute_dtype)

    # ---- pallas_call ---------------------------------------------------------
    grid = (N, P // tile_p)
    big_weight = Cout * K * in_isz > (4 << 20)
    if big_weight:
        # constant operand: fetched once, keep a single VMEM copy (v7x VMEM).
        w_spec = pl.BlockSpec((Cout, K), lambda n, t: (0, 0),
                              pipeline_mode=pl.Buffered(1))
    else:
        w_spec = pl.BlockSpec((Cout, K), lambda n, t: (0, 0))
    s_spec = pl.BlockSpec((Cout, 1), lambda n, t: (0, 0))

    out_flat = pl.pallas_call(
        _embed_kernel,
        out_shape=jax.ShapeDtypeStruct((N, Cout, P), out_dtype),
        grid_spec=pltpu.PrefetchScalarGridSpec(
            num_scalar_prefetch=0,
            grid=grid,
            in_specs=[
                pl.BlockSpec((1, K, tile_p), lambda n, t: (n, 0, t)),
                w_spec,
                s_spec,
            ],
            out_specs=pl.BlockSpec((1, Cout, tile_p), lambda n, t: (n, 0, t)),
        ),
        compiler_params=pltpu.CompilerParams(
            dimension_semantics=("parallel", "parallel"),
            vmem_limit_bytes=32 * 1024 * 1024,
            allow_input_fusion=[True, False, False],
        ),
    )(x, w_big, shift)

    out = out_flat[:, :, :HoWo].reshape(N, Cout, Ho, Wo)        # already NCHW
    return out


def _reference(x_nchw, weight, gamma, beta, run_mean, run_var,
               *, n_group, spatial_reduce, eps=1e-5):
    """Pure-JAX reference in the ORIGINAL op order (conv -> pool -> BN -> act)."""
    N, Cin, H, W = x_nchw.shape
    Cout = weight.shape[0]
    r = spatial_reduce
    ipg, opg = Cin // n_group, Cout // n_group
    x = jnp.transpose(x_nchw, (0, 2, 3, 1))  # NHWC
    outs = []
    for g in range(n_group):
        xg = x[..., g * ipg:(g + 1) * ipg]
        wg = weight[g * opg:(g + 1) * opg, :, 0, 0]              # (opg, ipg)
        outs.append(jnp.einsum("nhwc,oc->nhwo", xg, wg))
    y = jnp.concatenate(outs, axis=-1)                           # (N,H,W,Cout)
    y = y[:, :H // r * r, :W // r * r, :]
    y = y.reshape(N, H // r, r, W // r, r, Cout).mean(axis=(2, 4))
    z = (y - run_mean) / jnp.sqrt(run_var + eps) * gamma + beta
    z = jnp.where(z >= 0, z, 0.01 * z)
    return jnp.transpose(z, (0, 3, 1, 2))


if __name__ == "__main__":
    # small shapes consistent with the module
    N, Cin, Cout, H, W = 2, 8, 8, 16, 16
    n_group, spatial_reduce = 2, 2

    key = jax.random.PRNGKey(0)
    k_x, k_w, k_g, k_b, k_m, k_v = jax.random.split(key, 6)

    x = jax.random.normal(k_x, (N, Cin, H, W), jnp.float32)
    # Conv2d grouped weight: (Cout, Cin/groups, 1, 1), no bias
    weight = jax.random.normal(k_w, (Cout, Cin // n_group, 1, 1),
                               jnp.float32) * 0.2
    # deterministic BN parameters / running stats (inference mode)
    gamma = 1.0 + 0.1 * jax.random.normal(k_g, (Cout,), jnp.float32)
    beta = 0.1 * jax.random.normal(k_b, (Cout,), jnp.float32)
    run_mean = 0.1 * jax.random.normal(k_m, (Cout,), jnp.float32)
    run_var = 1.0 + 0.1 * jax.nn.softplus(
        jax.random.normal(k_v, (Cout,), jnp.float32))

    ref = _reference(x, weight, gamma, beta, run_mean, run_var,
                     n_group=n_group, spatial_reduce=spatial_reduce)

    # default path: bf16 matmul operands (f32 accumulation) -- all generations
    fwd_bf16 = jax.jit(functools.partial(
        group_pixel_embed, n_group=n_group, spatial_reduce=spatial_reduce,
        compute_dtype=jnp.bfloat16))
    out = jax.block_until_ready(fwd_bf16(x, weight, gamma, beta,
                                         run_mean, run_var))
    assert out.shape == (N, Cout, H // spatial_reduce, W // spatial_reduce)
    np.testing.assert_allclose(np.asarray(out), np.asarray(ref),
                               rtol=5e-2, atol=5e-2)

    # f32 operands: tight check against the conv->pool reference order.
    fwd_f32 = jax.jit(functools.partial(
        group_pixel_embed, n_group=n_group, spatial_reduce=spatial_reduce,
        compute_dtype=jnp.float32))
    out_f32 = jax.block_until_ready(fwd_f32(x, weight, gamma, beta,
                                            run_mean, run_var))
    np.testing.assert_allclose(np.asarray(out_f32), np.asarray(ref),
                               rtol=1e-4, atol=1e-5)

    print("KERNEL_OK")
</pallas_src>

<mosaic_0001>
module attributes {stable_mosaic.version = 11 : i64} {
  func.func @_embed_kernel(%arg0: i32, %arg1: i32, %arg2: memref<1x32x128xbf16, #tpu.memory_space<vmem>>, %arg3: memref<8x32xbf16, #tpu.memory_space<vmem>>, %arg4: memref<8x1xf32, #tpu.memory_space<vmem>>, %arg5: memref<1x8x128xf32, #tpu.memory_space<vmem>>) attributes {dimension_semantics = [#tpu.dimension_semantics<parallel>, #tpu.dimension_semantics<parallel>], iteration_bounds = array<i64: 2, 1>, scalar_prefetch = 0 : i64, scratch_operands = 0 : i64, tpu.core_type = #tpu.core_type<tc>, window_params = [{transform_indices = @transform_0, window_bounds = array<i64: 1, 32, 128>}, {pipeline_mode = #tpu.pipeline_mode<synchronous>, transform_indices = @transform_1, window_bounds = array<i64: 8, 32>}, {pipeline_mode = #tpu.pipeline_mode<synchronous>, transform_indices = @transform_2, window_bounds = array<i64: 8, 1>}, {transform_indices = @transform_3, window_bounds = array<i64: 1, 8, 128>}]} {
    %c0 = arith.constant 0 : index
    %c0_0 = arith.constant 0 : index
    %0 = vector.load %arg3[%c0, %c0_0] : memref<8x32xbf16, #tpu.memory_space<vmem>>, vector<8x32xbf16>
    %c0_1 = arith.constant 0 : index
    %c0_2 = arith.constant 0 : index
    %c0_3 = arith.constant 0 : index
    %1 = vector.load %arg2[%c0_1, %c0_2, %c0_3] : memref<1x32x128xbf16, #tpu.memory_space<vmem>>, vector<1x32x128xbf16>
    %2 = vector.shape_cast %1 : vector<1x32x128xbf16> to vector<32x128xbf16>
    %cst = arith.constant dense<0.000000e+00> : vector<8x128xf32>
    %3 = tpu.matmul %0, %2, %cst {dimension_numbers = #tpu.dot_dimension_numbers<[1], [0], [0], [1], [0, 0, 1, 1], [], []>} : vector<8x32xbf16>, vector<32x128xbf16>, vector<8x128xf32> -> vector<8x128xf32>
    %c0_4 = arith.constant 0 : index
    %c0_5 = arith.constant 0 : index
    %4 = vector.load %arg4[%c0_4, %c0_5] : memref<8x1xf32, #tpu.memory_space<vmem>>, vector<8x1xf32>
    %5 = vector.broadcast %4 : vector<8x1xf32> to vector<8x128xf32>
    %6 = arith.addf %3, %5 : vector<8x128xf32>
    %cst_6 = arith.constant 0.000000e+00 : f32
    %7 = vector.broadcast %cst_6 : f32 to vector<8x128xf32>
    %8 = arith.cmpf oge, %6, %7 : vector<8x128xf32>
    %cst_7 = arith.constant 0.00999999977 : f32
    %9 = vector.broadcast %cst_7 : f32 to vector<8x128xf32>
    %10 = arith.mulf %9, %6 : vector<8x128xf32>
    %11 = arith.select %8, %6, %10 : vector<8x128xi1>, vector<8x128xf32>
    %c0_8 = arith.constant 0 : index
    %c0_9 = arith.constant 0 : index
    %c0_10 = arith.constant 0 : index
    %12 = vector.load %arg5[%c0_8, %c0_9, %c0_10] : memref<1x8x128xf32, #tpu.memory_space<vmem>>, vector<1x8x128xf32>
    %13 = vector.shape_cast %12 : vector<1x8x128xf32> to vector<8x128xf32>
    %14 = vector.shape_cast %11 : vector<8x128xf32> to vector<1x8x128xf32>
    tpu.vector_store %arg5[%c0_8, %c0_9, %c0_10], %14 {strides = array<i32>} : memref<1x8x128xf32, #tpu.memory_space<vmem>>, vector<1x8x128xf32>,
    return
  }
  func.func @transform_0(%arg0: i32, %arg1: i32) -> (i32, i32, i32) {
    %c0_i32 = arith.constant 0 : i32
    %c0_i32_0 = arith.constant 0 : i32
    return %arg0, %c0_i32, %arg1 : i32, i32, i32
  }
  func.func @transform_1(%arg0: i32, %arg1: i32) -> (i32, i32) {
    %c0_i32 = arith.constant 0 : i32
    %c0_i32_0 = arith.constant 0 : i32
    %c0_i32_1 = arith.constant 0 : i32
    return %c0_i32, %c0_i32_0 : i32, i32
  }
  func.func @transform_2(%arg0: i32, %arg1: i32) -> (i32, i32) {
    %c0_i32 = arith.constant 0 : i32
    %c0_i32_0 = arith.constant 0 : i32
    %c0_i32_1 = arith.constant 0 : i32
    return %c0_i32, %c0_i32_0 : i32, i32
  }
  func.func @transform_3(%arg0: i32, %arg1: i32) -> (i32, i32, i32) {
    %c0_i32 = arith.constant 0 : i32
    %c0_i32_0 = arith.constant 0 : i32
    return %arg0, %c0_i32, %arg1 : i32, i32, i32
  }
}

</mosaic_0001>

<llo_original>
// kernel: tile.17
$region0: #{tile.17}
  %s0 = inlined_call_operand.vmem [shape: f32[8,4,8], index: 0, kind: input, shape index: {}]
  %s1 = inlined_call_operand.vmem [shape: f32[8,32], index: 1, kind: output, shape index: {}]
  $region1: #{tile.17} parent=0
    #allocation0 [shape = 'u8[32768]{0}', space=vmem, size = 0x8000, scoped, tag = 'scoped mem for input reshape']
    %s3 = sshllo.u32 0, 4
    %s4 = smul.addr 4, 7
    %s5 = scalar_lea.vmem %s0, %s4
    %v6 = vld [vmem:[%s5] sm:%s3]
    %s7 = scalar_lea.vmem [#allocation0], 56
    %8 = vst [vmem:[%s7] sm:%s3] %v6
    %s9 = smul.addr 4, 6
    %s10 = scalar_lea.vmem %s0, %s9
    %v11 = vld [vmem:[%s10] sm:%s3]
    %s12 = scalar_lea.vmem [#allocation0], 48
    %13 = vst [vmem:[%s12] sm:%s3] %v11
    %s14 = smul.addr 4, 5
    %s15 = scalar_lea.vmem %s0, %s14
    %v16 = vld [vmem:[%s15] sm:%s3]
    %s17 = scalar_lea.vmem [#allocation0], 40
    %18 = vst [vmem:[%s17] sm:%s3] %v16
    %s19 = smul.addr 4, 4
    %s20 = scalar_lea.vmem %s0, %s19
    %v21 = vld [vmem:[%s20] sm:%s3]
    %s22 = scalar_lea.vmem [#allocation0], 32
    %23 = vst [vmem:[%s22] sm:%s3] %v21
    %s24 = smul.addr 4, 3
    %s25 = scalar_lea.vmem %s0, %s24
    %v26 = vld [vmem:[%s25] sm:%s3]
    %s27 = scalar_lea.vmem [#allocation0], 24
    %28 = vst [vmem:[%s27] sm:%s3] %v26
    %s29 = smul.addr 4, 2
    %s30 = scalar_lea.vmem %s0, %s29
    %v31 = vld [vmem:[%s30] sm:%s3]
    %s32 = scalar_lea.vmem [#allocation0], 16
    %33 = vst [vmem:[%s32] sm:%s3] %v31
    %s34 = scalar_lea.vmem %s0, 4
    %v35 = vld [vmem:[%s34] sm:%s3]
    %s36 = scalar_lea.vmem [#allocation0], 8
    %37 = vst [vmem:[%s36] sm:%s3] %v35
    %v38 = vld [vmem:[%s0] sm:%s3]
    %39 = vst [vmem:[#allocation0] sm:%s3] %v38
    %v40 = vld [vmem:[#allocation0] ss:$8 sm:$0xf]
    %v41 = vld [vmem:[#allocation0] ss:$8 sm:$0xf0]
    %vm42 = vcmask 1047556
    %v43 = vsel %vm42, %v41, %v40
    %vm44 = vcmask 64512
    %45 = vst.msk [vmem:[%s1] sm:$0xff] %vm44, %v43
    %s46 = scalar_lea.vmem [#allocation0], 3
    %v47 = vld [vmem:[%s46] ss:$8 sm:$0xf]
    %s48 = scalar_lea.vmem [#allocation0], 3
    %v49 = vld [vmem:[%s48] ss:$8 sm:$0xf0]
    %vm50 = vcmask 1047556
    %v51 = vsel %vm50, %v49, %v47
    %52 = vrot.lane.b32.xlu0 %v51, 24
    %v53 = vpop.permute.xlu0 %52
    %vm54 = vcmask 261312
    %55 = vst.msk [vmem:[%s1] sm:$0xff] %vm54, %v53
    %s56 = scalar_lea.vmem [#allocation0], 2
    %v57 = vld [vmem:[%s56] ss:$8 sm:$0xf]
    %s58 = scalar_lea.vmem [#allocation0], 2
    %v59 = vld [vmem:[%s58] ss:$8 sm:$0xf0]
    %vm60 = vcmask 1047556
    %v61 = vsel %vm60, %v59, %v57
    %62 = vrot.lane.b32.xlu0 %v61, 16
    %v63 = vpop.permute.xlu0 %62
    %vm64 = vcmask 195712
    %65 = vst.msk [vmem:[%s1] sm:$0xff] %vm64, %v63
    %s66 = scalar_lea.vmem [#allocation0], 1
    %v67 = vld [vmem:[%s66] ss:$8 sm:$0xf]
    %s68 = scalar_lea.vmem [#allocation0], 1
    %v69 = vld [vmem:[%s68] ss:$8 sm:$0xf0]
    %vm70 = vcmask 1047556
    %v71 = vsel %vm70, %v69, %v67
    %72 = vrot.lane.b32.xlu0 %v71, 8
    %v73 = vpop.permute.xlu0 %72
    %vm74 = vcmask 130112
    %75 = vst.msk [vmem:[%s1] sm:$0xff] %vm74, %v73

// kernel: group_pixel_embed.2
$region0: #{group_pixel_embed.2}
  #allocation0 [shape = 'u32[]', space=smem, size = 0x4, offset = 0x4, fixed_abs, tag = 'smem constant byte address 0x4 - core index']
  #allocation1 [shape = 'u32[144,128]{1,0:T(1,128)}', space=vmem, size = 0x12000, scoped, tag = 'internal scratch']
  #allocation2 [shape = 'u32[2048]{0}', space=vmem, size = 0x2000, scoped, tag = 'scoped memory for group_pixel_embed.2']
  #allocation3 [shape = 'u32[2048]{0}', space=vmem, size = 0x2000, scoped, tag = 'scoped memory for group_pixel_embed.2']
  #allocation4 [shape = 'u32[2048]{0}', space=vmem, size = 0x2000, scoped, tag = 'scoped memory for group_pixel_embed.2']
  #allocation5 [shape = 'u32[2048]{0}', space=vmem, size = 0x2000, scoped, tag = 'scoped memory for group_pixel_embed.2']
  #allocation6 [shape = 'u32[2048]{0}', space=vmem, size = 0x2000, scoped, tag = 'scoped memory for group_pixel_embed.2']
  %s0 = inlined_call_operand.vmem [shape: bf16[8,32], index: 0, kind: input, shape index: {}]
  %s1 = inlined_call_operand.vmem [shape: f32[8,1], index: 1, kind: input, shape index: {}]
  %s2 = inlined_call_operand.vmem [shape: bf16[2,32,64], index: 2, kind: input, shape index: {}]
  %s3 = inlined_call_operand.<no memory space> [shape: bf16[], index: 3, kind: input, shape index: {}]
  %s4 = inlined_call_operand.vmem [shape: f32[2,8,128], index: 4, kind: output, shape index: {}]
  %s5 = sld [smem:[#allocation0]]
  $region45: #{group_pixel_embed.2} parent=0
    _
  %s7 = ssub.s32 1, %s5
  %s8 = scalar_select 0, %s7, %s5
  %v9 = vstv %s3
  %v10 = vunpack.i.l.bf16 %v9
  %v12 = vunpack.i.h.bf16 %v9
  loop: start=0, step=1, limit=4
  $region2: #{group_pixel_embed.2} parent=0 // loop_pre_header
    _
  $region3: #{group_pixel_embed.2} parent=0 // loop_header
    %s15 = sphi 0, %s19
    %p16 = scmp.ge.s32.totalorder %s15, 4
    %s22 = sphi 0, %s34
    %s23 = sphi 0, %s30
    %s24 = sphi 0, %s22
    %s25 = sphi 0, %s23
    %s26 = sphi 0, %s24
    %s27 = sphi 0, %s25
    %s39 = sphi 0, %s41
    %s42 = sphi 0, %s39
    %s43 = sphi 0, %s42
    %s59 = sphi 0, %s43
    %s63 = sphi 0, %s63
    %s65 = sphi 0, %s63
    %s66 = sphi 0, %s65
    %s80 = sphi 0, %s66
    %s84 = sphi 0, %s84
    %s86 = sphi 0, %s84
    %s87 = sphi 0, %s86
    %s101 = sphi 0, %s87
    %s109 = sphi 0, %s111
    %s112 = sphi 0, %s109
    %s113 = sphi 0, %s112
    %s129 = sphi 0, %s113
  $region4: #{group_pixel_embed.2} parent=0 // loop_header_branch
    %18 = sbr.rel (%p16) target = $region8
  $region5: #{group_pixel_embed.2} parent=0 // loop_body
    %s20 = ssub.s32 %s15, 1
    %s21 = ssub.s32 %s15, 2
    %s28 = sadd.s32 1, %s23
    %p29 = scmp.ge.s32.totalorder %s28, 1
    %s30 = scalar_select %p29, 0, %s28
    %s31 = sadd.s32 1, %s22
    %s32 = scalar_select %p29, %s31, %s22
    %p33 = scmp.ge.s32.totalorder %s32, 2
    %s34 = scalar_select %p33, 0, %s32
    %s35 = ssub.s32 %s22, %s34
    %s36 = ssub.s32 %s23, %s30
    %s37 = sor.u32 %s35, %s36
    %p38 = scmp.eq.s32.totalorder %s37, 0
    %s40 = sadd.s32 %s39, 1
    %s41 = scalar_select %p38, %s39, %s40
    %p44 = pneg %p38
    %p45 = scmp.eq.s32.totalorder %s15, 1
    %p46 = por %p44, %p45
    %p47 = scmp.ne.s32.totalorder %s39, %s42
    %p48 = scmp.eq.s32.totalorder %s15, 0
    %p49 = por %p47, %p48
    %p50 = scmp.ne.s32.totalorder %s39, %s42
    %p51 = scmp.eq.s32.totalorder %s20, 1
    %p52 = por %p50, %p51
    %p53 = scmp.ne.s32.totalorder %s42, %s43
    %p54 = scmp.eq.s32.totalorder %s20, 0
    %p55 = por %p53, %p54
    %p56 = scmp.ne.s32.totalorder %s42, %s43
    %p57 = scmp.eq.s32.totalorder %s21, 1
    %p58 = por %p56, %p57
    %p60 = scmp.ne.s32.totalorder %s43, %s59
    %p61 = scmp.eq.s32.totalorder %s21, 0
    %p62 = por %p60, %p61
    %s64 = sadd.s32 %s63, 1
    %p67 = scmp.eq.s32.totalorder %s15, 1
    %p68 = scmp.ne.s32.totalorder %s63, %s65
    %p69 = scmp.eq.s32.totalorder %s15, 0
    %p70 = por %p68, %p69
    %p71 = scmp.ne.s32.totalorder %s63, %s65
    %p72 = scmp.eq.s32.totalorder %s20, 1
    %p73 = por %p71, %p72
    %p74 = scmp.ne.s32.totalorder %s65, %s66
    %p75 = scmp.eq.s32.totalorder %s20, 0
    %p76 = por %p74, %p75
    %p77 = scmp.ne.s32.totalorder %s65, %s66
    %p78 = scmp.eq.s32.totalorder %s21, 1
    %p79 = por %p77, %p78
    %p81 = scmp.ne.s32.totalorder %s66, %s80
    %p82 = scmp.eq.s32.totalorder %s21, 0
    %p83 = por %p81, %p82
    %s85 = sadd.s32 %s84, 1
    %p88 = scmp.eq.s32.totalorder %s15, 1
    %p89 = scmp.ne.s32.totalorder %s84, %s86
    %p90 = scmp.eq.s32.totalorder %s15, 0
    %p91 = por %p89, %p90
    %p92 = scmp.ne.s32.totalorder %s84, %s86
    %p93 = scmp.eq.s32.totalorder %s20, 1
    %p94 = por %p92, %p93
    %p95 = scmp.ne.s32.totalorder %s86, %s87
    %p96 = scmp.eq.s32.totalorder %s20, 0
    %p97 = por %p95, %p96
    %p98 = scmp.ne.s32.totalorder %s86, %s87
    %p99 = scmp.eq.s32.totalorder %s21, 1
    %p100 = por %p98, %p99
    %p102 = scmp.ne.s32.totalorder %s87, %s101
    %p103 = scmp.eq.s32.totalorder %s21, 0
    %p104 = por %p102, %p103
    %s105 = ssub.s32 %s22, %s34
    %s106 = ssub.s32 %s23, %s30
    %s107 = sor.u32 %s105, %s106
    %p108 = scmp.eq.s32.totalorder %s107, 0
    %s110 = sadd.s32 %s109, 1
    %s111 = scalar_select %p108, %s109, %s110
    %p114 = pneg %p108
    %p115 = scmp.eq.s32.totalorder %s15, 1
    %p116 = por %p114, %p115
    %p117 = scmp.ne.s32.totalorder %s109, %s112
    %p118 = scmp.eq.s32.totalorder %s15, 0
    %p119 = por %p117, %p118
    %p120 = scmp.ne.s32.totalorder %s109, %s112
    %p121 = scmp.eq.s32.totalorder %s20, 1
    %p122 = por %p120, %p121
    %p123 = scmp.ne.s32.totalorder %s112, %s113
    %p124 = scmp.eq.s32.totalorder %s20, 0
    %p125 = por %p123, %p124
    %p126 = scmp.ne.s32.totalorder %s112, %s113
    %p127 = scmp.eq.s32.totalorder %s21, 1
    %p128 = por %p126, %p127
    %p130 = scmp.ne.s32.totalorder %s113, %s129
    %p131 = scmp.eq.s32.totalorder %s21, 0
    %p132 = por %p130, %p131
    %p133 = scmp.le.s32.totalorder 1, %s15
    %p134 = scmp.lt.s32.totalorder %s15, 3
    %p135 = pnand %p133, %p134
    %p136 = pneg %p135
    // Predicated region
    $region9: #{group_pixel_embed.2} parent=5 // pred_check
      _
    $region10: #{group_pixel_embed.2} parent=5 // pred_check_branch
      %138 = sbr.rel (%p135) target = $region12
    $region11: #{group_pixel_embed.2} parent=5 // pred_region
      %s139 = ssub.s32 %s15, 1
      // Predicated region
      $region13: #{group_pixel_embed.2} parent=11 // pred_check
        %p140 = pneg %p76
      $region14: #{group_pixel_embed.2} parent=11 // pred_check_branch
        %142 = sbr.rel (%p140) target = $region16
      $region15: #{group_pixel_embed.2} parent=11 // pred_region
        _
      $region16: #{group_pixel_embed.2} parent=11 // pred_fallthru
        _
      // Predicated region
      $region17: #{group_pixel_embed.2} parent=11 // pred_check
        %p143 = pneg %p97
      $region18: #{group_pixel_embed.2} parent=11 // pred_check_branch
        %145 = sbr.rel (%p143) target = $region20
      $region19: #{group_pixel_embed.2} parent=11 // pred_region
        _
      $region20: #{group_pixel_embed.2} parent=11 // pred_fallthru
        _
    $region12: #{group_pixel_embed.2} parent=5 // pred_fallthru
      _
    %p146 = scmp.lt.s32.totalorder %s15, 2
    // Predicated region
    $region21: #{group_pixel_embed.2} parent=5 // pred_check
      %p147 = pneg %p146
    $region22: #{group_pixel_embed.2} parent=5 // pred_check_branch
      %149 = sbr.rel (%p147) target = $region24
    $region23: #{group_pixel_embed.2} parent=5 // pred_region
      // Predicated region
      $region25: #{group_pixel_embed.2} parent=23 // pred_check
        %p150 = pneg %p49
      $region26: #{group_pixel_embed.2} parent=23 // pred_check_branch
        %152 = sbr.rel (%p150) target = $region28
      $region27: #{group_pixel_embed.2} parent=23 // pred_region
        %s153 = ssub.s32 1, %s23
        %s154 = smul.u32 256, %s153
        %p155 = scmp.lt.s32.totalorder %s22, 1
        %s156 = scalar_select %p155, %s22, 1
        %p157 = scmp.lt.s32.totalorder %s23, 0
        %s158 = scalar_select %p157, %s23, 0
        %s159 = smul.addr %s156, 4
        %s160 = sadd.s32 %s158, %s159
        %s161 = smul.addr %s160, 4
        %s162 = scalar_lea.vmem %s2, %s161
        %s163 = ssub.s32 1, %s23
        %s164 = smul.u32 256, %s163
      $region28: #{group_pixel_embed.2} parent=23 // pred_fallthru
        _
    $region24: #{group_pixel_embed.2} parent=5 // pred_fallthru
      _
    %p165 = scmp.le.s32.totalorder 1, %s15
    %p166 = scmp.lt.s32.totalorder %s15, 3
    %p167 = pnand %p165, %p166
    %p168 = pneg %p167
    // Predicated region
    $region29: #{group_pixel_embed.2} parent=5 // pred_check
      _
    $region30: #{group_pixel_embed.2} parent=5 // pred_check_branch
      %170 = sbr.rel (%p167) target = $region32
    $region31: #{group_pixel_embed.2} parent=5 // pred_region
      #allocation7 [shape = 'u8[8192]{0}', space=vmem, size = 0x2000, dematerialized = true, scoped, tag = 'FusionAdapter Buffer %fusion.1 = bf16[2,32,128]{2,1,0:T(8,128)(2,1)} fusion(%param_2.1, %param_3), kind=kLoop, calls=%fused_computation.1.clone, metadata={op_name="jit(group_pixel_embed)/jit(_pad)/pad" stack_frame_id=11}']
      %s171 = ssub.s32 %s15, 1
      %s172 = ssub.s32 1, %s25
      %s173 = smul.u32 256, %s172
      %p174 = scmp.lt.s32.totalorder %s24, 1
      %s175 = scalar_select %p174, %s24, 1
      %p176 = scmp.lt.s32.totalorder %s25, 0
      %s177 = scalar_select %p176, %s25, 0
      %s178 = smul.addr %s175, 4
      %s179 = sadd.s32 %s177, %s178
      %s180 = smul.addr %s179, 4
      %s181 = scalar_lea.vmem %s2, %s180
      %p182 = pneg %p55
      %p183 = pneg %p52
      %p184 = pneg %p76
      %p185 = pneg %p73
      %p186 = pneg %p97
      %p187 = pneg %p94
      %p188 = pneg %p125
      %p189 = pneg %p122
      %p190 = scmp.lt.s32.totalorder %s24, 1
      %s191 = scalar_select %p190, %s24, 1
      %p192 = scmp.lt.s32.totalorder %s25, 0
      %s193 = scalar_select %p192, %s25, 0
      %s194 = sadd.s32 %s193, %s191
      %s195 = smul.addr %s194, 8
      %s196 = scalar_lea.vmem %s4, %s195
      %s197 = ssub.s32 1, %s25
      %s198 = smul.u32 256, %s197
      %p199 = scmp.lt.s32.totalorder %s24, 1
      %s200 = scalar_select %p199, %s24, 1
      %p201 = scmp.lt.s32.totalorder %s25, 0
      %s202 = scalar_select %p201, %s25, 0
      %s203 = smul.addr %s200, 4
      %s204 = sadd.s32 %s202, %s203
      %s205 = smul.addr %s204, 4
      %s206 = scalar_lea.vmem %s2, %s205
      %s207 = ssub.s32 1, %s25
      %s208 = smul.u32 256, %s207
      %p209 = scmp.lt.s32.totalorder %s24, 1
      %s210 = scalar_select %p209, %s24, 1
      %p211 = scmp.lt.s32.totalorder %s25, 0
      %s212 = scalar_select %p211, %s25, 0
      %s213 = sadd.s32 %s212, %s210
      %s214 = smul.addr %s213, 8
      %s215 = scalar_lea.vmem %s4, %s214
      %s216 = ssub.s32 0, %s25
      %p217 = scmp.lt.s32.totalorder %s216, 0
      %s218 = scalar_select %p217, 0, 255
      %s219 = sshrl.u32 %s218, 1
      %s220 = sor.u32 %s218, %s219
      %s221 = sand.u32 %s220, 85
      %s222 = sshrl.u32 %s221, 1
      %s223 = sor.u32 %s221, %s222
      %s224 = sand.u32 51, %s223
      %s225 = sshrl.u32 %s224, 2
      %s226 = sor.u32 %s224, %s225
      %s227 = sand.u32 15, %s226
      %v228 = vld [vmem:[%s206] sm:%s227]
      %v229 = vunpack.c.l.bf16 %v228
      %v230 = vunpack.c.h.bf16 %v228
      %s231 = ssub.s32 0, %s25
      %v232 = vstv %s231
      %vm233 = vcmp.lt.s32.totalorder %v232, 0
      %v234 = vsel %vm233, %v10, %v229
      %s235 = smul.addr %s25, 128
      %v236 = vlaneseq
      %v237 = vand.u32 %v236, 127
      %v238 = vstv %s235
      %v239 = vadd.s32 %v237, %v238
      %vm240 = vcmp.lt.s32.totalorder %v239, 64
      %v241 = vsel %vm240, %v234, %v10
      %v242 = vpack.c.bf16 0.0, %v241
      %244 = vst [vmem:[#allocation7] sm:$0xf] %v242
      %s245 = scalar_lea.vmem %s206, 4
      %s246 = ssub.s32 0, %s25
      %p247 = scmp.lt.s32.totalorder %s246, 0
      %s248 = scalar_select %p247, 0, 255
      %s249 = sshrl.u32 %s248, 1
      %s250 = sor.u32 %s248, %s249
      %s251 = sand.u32 %s250, 85
      %s252 = sshrl.u32 %s251, 1
      %s253 = sor.u32 %s251, %s252
      %s254 = sand.u32 51, %s253
      %s255 = sshrl.u32 %s254, 2
      %s256 = sor.u32 %s254, %s255
      %s257 = sand.u32 15, %s256
      %v258 = vld [vmem:[%s245] sm:%s257]
      %v259 = vunpack.c.l.bf16 %v258
      %v260 = vunpack.c.h.bf16 %v258
      %s261 = ssub.s32 0, %s25
      %v262 = vstv %s261
      %vm263 = vcmp.lt.s32.totalorder %v262, 0
      %v264 = vsel %vm263, %v10, %v259
      %s265 = smul.addr %s25, 128
      %v266 = vlaneseq
      %v267 = vand.u32 %v266, 127
      %v268 = vstv %s265
      %v269 = vadd.s32 %v267, %v268
      %vm270 = vcmp.lt.s32.totalorder %v269, 64
      %v271 = vsel %vm270, %v264, %v10
      %s272 = scalar_lea.vmem [#allocation7], 4
      %v273 = vpack.c.bf16 0.0, %v271
      %275 = vst [vmem:[%s272] sm:$0xf] %v273
      %s276 = scalar_lea.vmem %s206, 8
      %s277 = ssub.s32 0, %s25
      %p278 = scmp.lt.s32.totalorder %s277, 0
      %s279 = scalar_select %p278, 0, 255
      %s280 = sshrl.u32 %s279, 1
      %s281 = sor.u32 %s279, %s280
      %s282 = sand.u32 %s281, 85
      %s283 = sshrl.u32 %s282, 1
      %s284 = sor.u32 %s282, %s283
      %s285 = sand.u32 51, %s284
      %s286 = sshrl.u32 %s285, 2
      %s287 = sor.u32 %s285, %s286
      %s288 = sand.u32 15, %s287
      %v289 = vld [vmem:[%s276] sm:%s288]
      %v290 = vunpack.c.l.bf16 %v289
      %v291 = vunpack.c.h.bf16 %v289
      %s292 = ssub.s32 0, %s25
      %v293 = vstv %s292
      %vm294 = vcmp.lt.s32.totalorder %v293, 0
      %v295 = vsel %vm294, %v10, %v290
      %s296 = smul.addr %s25, 128
      %v297 = vlaneseq
      %v298 = vand.u32 %v297, 127
      %v299 = vstv %s296
      %v300 = vadd.s32 %v298, %v299
      %vm301 = vcmp.lt.s32.totalorder %v300, 64
      %v302 = vsel %vm301, %v295, %v10
      %s303 = scalar_lea.vmem [#allocation7], 8
      %v304 = vpack.c.bf16 0.0, %v302
      %306 = vst [vmem:[%s303] sm:$0xf] %v304
      %s307 = scalar_lea.vmem %s206, 12
      %s308 = ssub.s32 0, %s25
      %p309 = scmp.lt.s32.totalorder %s308, 0
      %s310 = scalar_select %p309, 0, 255
      %s311 = sshrl.u32 %s310, 1
      %s312 = sor.u32 %s310, %s311
      %s313 = sand.u32 %s312, 85
      %s314 = sshrl.u32 %s313, 1
      %s315 = sor.u32 %s313, %s314
      %s316 = sand.u32 51, %s315
      %s317 = sshrl.u32 %s316, 2
      %s318 = sor.u32 %s316, %s317
      %s319 = sand.u32 15, %s318
      %v320 = vld [vmem:[%s307] sm:%s319]
      %v321 = vunpack.c.l.bf16 %v320
      %v322 = vunpack.c.h.bf16 %v320
      %s323 = ssub.s32 0, %s25
      %v324 = vstv %s323
      %vm325 = vcmp.lt.s32.totalorder %v324, 0
      %v326 = vsel %vm325, %v10, %v321
      %s327 = smul.addr %s25, 128
      %v328 = vlaneseq
      %v329 = vand.u32 %v328, 127
      %v330 = vstv %s327
      %v331 = vadd.s32 %v329, %v330
      %vm332 = vcmp.lt.s32.totalorder %v331, 64
      %v333 = vsel %vm332, %v326, %v10
      %s334 = scalar_lea.vmem [#allocation7], 12
      %v335 = vpack.c.bf16 0.0, %v333
      %337 = vst [vmem:[%s334] sm:$0xf] %v335
      %v339 = vld [vmem:[%s0] sm:$0xf]
      %v340 = vld [vmem:[#allocation7] sm:$0xf]
      %v341 = vld [vmem:[#allocation7 + $0x4] sm:$0xf]
      %v342 = vld [vmem:[#allocation7 + $0x8] sm:$0xf]
      %v343 = vld [vmem:[#allocation7 + $0xc] sm:$0xf]
      %v344 = vld [vmem:[%s1] sm:$0xff]
      %346 = vset.pattern.permute.xlu0 0
      %347 = vperm.xlu0 %346, %v344
      %v348 = vpop.permute.xlu0 %347
      %v354 = vunpack.c.l.b16 %v340
      %v355 = vunpack.c.l.b16 %v341
      %v356 = vunpack.c.l.b16 %v342
      %v357 = vunpack.c.l.b16 %v343
      %v358 = vpack.c.b16 %v355, %v354
      %v359 = vpack.c.b16 %v357, %v356
      %vm362 = vcmask 261120
      %v364 = vsel %vm362, %v339, 0
      %366 = vmatprep.subr.bf16.mxu0 0
      %367 = vmatpush1.bf16.msra.mxu0 %v358
      %368 = vmatprep.subr.bf16.mxu0 0
      %369 = vmatpush1.bf16.msra.mxu0 %v359
      %370 = vmatprep.subr.bf16.mxu0 0
      %371 = vmatpush1.bf16.msra.mxu0 0
      %372 = vmatprep.subr.bf16.mxu0 0
      %373 = vmatpush1.bf16.msra.mxu0 0
      %374 = vmatprep.subr.bf16.mxu0 0
      %375 = vmatpush1.bf16.msra.mxu0 0
      %376 = vmatprep.subr.bf16.mxu0 0
      %377 = vmatpush1.bf16.msra.mxu0 0
      %378 = vmatprep.subr.bf16.mxu0 0
      %379 = vmatpush1.bf16.msra.mxu0 0
      %380 = vmatprep.subr.bf16.mxu0 0
      %381 = vmatpush1.bf16.msra.mxu0 0
      %382 = vmatprep.subr.bf16.mxu0 0
      %383 = vmatpush1.bf16.msra.mxu0 0
      %384 = vmatprep.subr.bf16.mxu0 0
      %385 = vmatpush1.bf16.msra.mxu0 0
      %386 = vmatprep.subr.bf16.mxu0 0
      %387 = vmatpush1.bf16.msra.mxu0 0
      %388 = vmatprep.subr.bf16.mxu0 0
      %389 = vmatpush1.bf16.msra.mxu0 0
      %390 = vmatprep.subr.bf16.mxu0 0
      %391 = vmatpush1.bf16.msra.mxu0 0
      %392 = vmatprep.subr.bf16.mxu0 0
      %393 = vmatpush1.bf16.msra.mxu0 0
      %394 = vmatprep.subr.bf16.mxu0 0
      %395 = vmatpush1.bf16.msra.mxu0 0
      %396 = vmatprep.subr.bf16.mxu0 0
      %397 = vmatpush1.bf16.msra.mxu0 0
      %398 = vmatprep.mubr.bf16.mxu0 0
      %399 = vmatmul.mubr.bf16.gmra.mrb[0].mxu0 %v364
      %v400 = vpop.f32.mrb[0].mxu0
      %v401 = vadd.f32 %v348, %v400
      %v402 = vpop.f32.mrb[0].mxu0
      %v403 = vpop.f32.mrb[0].mxu0
      %v404 = vpop.f32.mrb[0].mxu0
      %405 = vdwg.mxu0
      %vm406 = vcmp.ge.f32.partialorder %v401, 0.0
      %v407 = vmul.f32 %v401, 0.01
      %v408 = vsel %vm406, %v401, %v407
      %409 = vst [vmem:[%s215] sm:$0xff] %v408
      %p410 = scmp.lt.s32.totalorder %s24, 1
      %s411 = scalar_select %p410, %s24, 1
      %p412 = scmp.lt.s32.totalorder %s25, 0
      %s413 = scalar_select %p412, %s25, 0
      %s414 = sadd.s32 %s413, %s411
      %s415 = smul.addr %s414, 8
      %s416 = scalar_lea.vmem %s4, %s415
      // Predicated region
      $region33: #{group_pixel_embed.2} parent=31 // pred_check
        %p417 = pneg %p122
      $region34: #{group_pixel_embed.2} parent=31 // pred_check_branch
        %419 = sbr.rel (%p417) target = $region36
      $region35: #{group_pixel_embed.2} parent=31 // pred_region
        _
      $region36: #{group_pixel_embed.2} parent=31 // pred_fallthru
        _
    $region32: #{group_pixel_embed.2} parent=5 // pred_fallthru
      _
    %p420 = scmp.le.s32.totalorder 2, %s15
    // Predicated region
    $region37: #{group_pixel_embed.2} parent=5 // pred_check
      %p421 = pneg %p420
    $region38: #{group_pixel_embed.2} parent=5 // pred_check_branch
      %423 = sbr.rel (%p421) target = $region40
    $region39: #{group_pixel_embed.2} parent=5 // pred_region
      %s424 = ssub.s32 %s15, 2
      // Predicated region
      $region41: #{group_pixel_embed.2} parent=39 // pred_check
        %p425 = pneg %p128
      $region42: #{group_pixel_embed.2} parent=39 // pred_check_branch
        %427 = sbr.rel (%p425) target = $region44
      $region43: #{group_pixel_embed.2} parent=39 // pred_region
        %p428 = scmp.lt.s32.totalorder %s26, 1
        %s429 = scalar_select %p428, %s26, 1
        %p430 = scmp.lt.s32.totalorder %s27, 0
        %s431 = scalar_select %p430, %s27, 0
        %s432 = sadd.s32 %s431, %s429
        %s433 = smul.addr %s432, 8
        %s434 = scalar_lea.vmem %s4, %s433
      $region44: #{group_pixel_embed.2} parent=39 // pred_fallthru
        _
    $region40: #{group_pixel_embed.2} parent=5 // pred_fallthru
      _
  $region6: #{group_pixel_embed.2} parent=0 // loop_footer
    %s19 = sadd.s32 1, %s15
  $region7: #{group_pixel_embed.2} parent=0 // loop_footer_branch
    %14 = sbr.rel target = $region3
  $region8: #{group_pixel_embed.2} parent=0 // loop_exit
    _

</llo_original>
